<compile_context>
chip_gen: v7x
topology: tpu7x:2x2x1
jax: 0.10.0
libtpu: 0.0.40
codegen_flags: <defaults>
</compile_context>

<pallas_src>
import jax
import jax.numpy as jnp
from jax import lax
from jax.experimental import pallas as pl
from jax.experimental.pallas import tpu as pltpu

QUANTILE = [0.2, 0.5, 0.8]

_LANE = 128
_MAX_TILE_B = 65536            # batch elements (lanes) per pipelined tile (~1 MiB inputs/step)
_MIN_B_FOR_CORE_SPLIT = 256    # below this a 2-way core split is pure padding overhead


def _round_up(x, m):
    return (x + m - 1) // m * m


def _quantile_loss_kernel(preds_ref, labels_ref, out_ref, acc_ref):
    """Grid = (G core-splits [parallel], T batch tiles [arbitrary/reduction]).

    preds_ref  : (Q, TILE_B)      f32  quantile predictions, batch on lanes
    labels_ref : (1 or Q, TILE_B) f32  broadcasts against preds on the VPU
    out_ref    : (8, 128)         f32  per-core partial-sum block (resident across T)
    acc_ref    : (1, TILE_B)      f32  per-lane partial sums (VMEM scratch)
    """
    t = pl.program_id(1)
    num_t = pl.num_programs(1)
    tile_b = acc_ref.shape[1]
    q_n = preds_ref.shape[0]

    @pl.when(t == 0)
    def _init():
        acc_ref[...] = jnp.zeros_like(acc_ref)
        out_ref[...] = jnp.zeros_like(out_ref)

    preds = preds_ref[...]                       # (Q, TILE_B)
    labels = labels_ref[...]                     # (1 or Q, TILE_B) -> broadcasts over sublanes

    # Quantiles baked in as a (Q, 1) compile-time constant column (broadcasts along lanes).
    row = lax.broadcasted_iota(jnp.int32, (q_n, 1), 0)
    q = jnp.full((q_n, 1), jnp.float32(QUANTILE[0]))
    for idx in range(1, q_n):
        q = jnp.where(row == idx, jnp.float32(QUANTILE[idx]), q)

    error = labels - preds                       # (Q, TILE_B)
    # pinball loss identity: max(q*e, (q-1)*e) == q*e + max(-e, 0)
    vector = q * error + jnp.maximum(-error, 0.0)

    # Reduce the tiny Q axis (sublanes) -> per-lane partial sums, accumulate across tiles.
    acc_ref[...] += jnp.sum(vector, axis=0, keepdims=True)

    @pl.when(t == num_t - 1)
    def _finalize():
        # Fold TILE_B lanes down to one 128-wide vector (done only once per core).
        def fold(j, carry):
            off = pl.multiple_of(j * _LANE, _LANE)
            return carry + acc_ref[:, pl.ds(off, _LANE)]

        total = lax.fori_loop(0, tile_b // _LANE, fold,
                              jnp.zeros((1, _LANE), jnp.float32))
        out_ref[0:1, :] = total                  # rows 1..7 stay zero from init


def quantile_regression_loss(preds, labels):
    """preds: (B, Q) float32; labels: (B,), (B, 1) or (B, Q). Returns scalar loss."""
    preds = jnp.asarray(preds, jnp.float32)
    labels = jnp.asarray(labels, jnp.float32)
    B, Q = preds.shape
    assert Q == len(QUANTILE), f"expected last dim {len(QUANTILE)}, got {Q}"

    # Lane-dense layout: batch on lanes, quantiles on sublanes.
    preds_t = preds.T                                      # (Q, B)
    if labels.ndim == 1:
        labels_t = labels.reshape(1, B)
    elif labels.shape == (B, 1):
        labels_t = labels.reshape(1, B)                    # NO materialized (B,Q) broadcast
    elif labels.shape == (B, Q):
        labels_t = labels.T
    else:
        labels_t = jnp.broadcast_to(labels, (B, Q)).T
    L = labels_t.shape[0]

    # Grid sizing: G core-splits (parallel, feeds both TCs on v7x) x T reduction tiles.
    G = 2 if B >= _MIN_B_FOR_CORE_SPLIT else 1
    per_core = pl.cdiv(B, G)
    tiles_per_core = pl.cdiv(per_core, _MAX_TILE_B)
    tile_b = _round_up(pl.cdiv(per_core, tiles_per_core), _LANE)
    padded_b = G * tiles_per_core * tile_b

    pad = padded_b - B
    if pad:
        # Zero-padded preds AND labels -> error = 0 -> pinball term = 0 (exactly no effect).
        preds_t = jnp.pad(preds_t, ((0, 0), (0, pad)))
        labels_t = jnp.pad(labels_t, ((0, 0), (0, pad)))

    def in_index(g, t):
        return (0, g * tiles_per_core + t)

    partials = pl.pallas_call(
        _quantile_loss_kernel,
        out_shape=jax.ShapeDtypeStruct((8 * G, _LANE), jnp.float32),
        grid_spec=pltpu.PrefetchScalarGridSpec(
            num_scalar_prefetch=0,
            grid=(G, tiles_per_core),
            in_specs=[
                pl.BlockSpec((Q, tile_b), in_index),       # preds  (Q on sublanes, B on lanes)
                pl.BlockSpec((L, tile_b), in_index),       # labels (broadcast in kernel)
            ],
            out_specs=pl.BlockSpec((8, _LANE), lambda g, t: (g, 0)),
            scratch_shapes=[pltpu.VMEM((1, tile_b), jnp.float32)],
        ),
        compiler_params=pltpu.CompilerParams(
            dimension_semantics=("parallel", "arbitrary")),
    )(preds_t, labels_t)

    # Only sublane 0 of each core's 8x128 block is non-zero; divisor is the TRUE B*Q.
    return jnp.sum(partials) / jnp.float32(B * Q)


def _reference_loss(preds, labels):
    q = jnp.asarray(QUANTILE, jnp.float32)
    error = labels - preds
    vector = jnp.maximum(q * error, (q - 1.0) * error)
    return jnp.mean(vector)


if __name__ == "__main__":
    key = jax.random.PRNGKey(0)
    k1, k2, k3, k4 = jax.random.split(key, 4)
    Q = len(QUANTILE)

    # Case 1: tiny batch, labels (B, 1) broadcast over quantiles (as in the training loop).
    B1 = 8
    preds1 = jax.random.normal(k1, (B1, Q), dtype=jnp.float32) * 10.0 + 70.0
    labels1 = jax.random.normal(k2, (B1, 1), dtype=jnp.float32) * 10.0 + 70.0
    loss1 = jax.block_until_ready(quantile_regression_loss(preds1, labels1))
    ref1 = _reference_loss(preds1, labels1)
    assert jnp.allclose(loss1, ref1, rtol=1e-5, atol=1e-4), (loss1, ref1)

    # Case 2: batch that exercises zero padding and the 2-way core split.
    B2 = 300
    preds2 = jax.random.normal(k3, (B2, Q), dtype=jnp.float32) * 10.0 + 70.0
    labels2 = jax.random.normal(k4, (B2, 1), dtype=jnp.float32) * 10.0 + 70.0
    loss2 = jax.block_until_ready(quantile_regression_loss(preds2, labels2))
    ref2 = _reference_loss(preds2, labels2)
    assert jnp.allclose(loss2, ref2, rtol=1e-5, atol=1e-4), (loss2, ref2)

    print("KERNEL_OK")
</pallas_src>

<mosaic_0001>
module attributes {stable_mosaic.version = 11 : i64} {
  func.func @_quantile_loss_kernel(%arg0: i32, %arg1: i32, %arg2: memref<3x128xf32, #tpu.memory_space<vmem>>, %arg3: memref<1x128xf32, #tpu.memory_space<vmem>>, %arg4: memref<8x128xf32, #tpu.memory_space<vmem>>, %arg5: memref<1x128xf32, #tpu.memory_space<vmem>>) attributes {dimension_semantics = [#tpu.dimension_semantics<parallel>, #tpu.dimension_semantics<arbitrary>], iteration_bounds = array<i64: 1, 1>, scalar_prefetch = 0 : i64, scratch_operands = 1 : i64, tpu.core_type = #tpu.core_type<tc>, window_params = [{transform_indices = @transform_0, window_bounds = array<i64: 3, 128>}, {transform_indices = @transform_1, window_bounds = array<i64: 1, 128>}, {transform_indices = @transform_2, window_bounds = array<i64: 8, 128>}]} {
    %c0_i32 = arith.constant 0 : i32
    %0 = arith.cmpi eq, %arg1, %c0_i32 : i32
    %1 = arith.extui %0 : i1 to i32
    %c0_i32_0 = arith.constant 0 : i32
    %2 = arith.cmpi ne, %1, %c0_i32_0 : i32
    scf.if %2 {
      %cst_15 = arith.constant 0.000000e+00 : f32
      %32 = vector.broadcast %cst_15 : f32 to vector<1x128xf32>
      %c0_16 = arith.constant 0 : index
      %c0_17 = arith.constant 0 : index
      %33 = vector.load %arg5[%c0_16, %c0_17] : memref<1x128xf32, #tpu.memory_space<vmem>>, vector<1x128xf32>
      tpu.vector_store %arg5[%c0_16, %c0_17], %32 {strides = array<i32>} : memref<1x128xf32, #tpu.memory_space<vmem>>, vector<1x128xf32>,
      %cst_18 = arith.constant 0.000000e+00 : f32
      %34 = vector.broadcast %cst_18 : f32 to vector<8x128xf32>
      %c0_19 = arith.constant 0 : index
      %c0_20 = arith.constant 0 : index
      %35 = vector.load %arg4[%c0_19, %c0_20] : memref<8x128xf32, #tpu.memory_space<vmem>>, vector<8x128xf32>
      tpu.vector_store %arg4[%c0_19, %c0_20], %34 {strides = array<i32>} : memref<8x128xf32, #tpu.memory_space<vmem>>, vector<8x128xf32>,
    } else {
    }
    %c0 = arith.constant 0 : index
    %c0_1 = arith.constant 0 : index
    %3 = vector.load %arg2[%c0, %c0_1] : memref<3x128xf32, #tpu.memory_space<vmem>>, vector<3x128xf32>
    %c0_2 = arith.constant 0 : index
    %c0_3 = arith.constant 0 : index
    %4 = vector.load %arg3[%c0_2, %c0_3] : memref<1x128xf32, #tpu.memory_space<vmem>>, vector<1x128xf32>
    %5 = tpu.iota {dimensions = array<i32: 0>} : vector<3x1xi32>
    %cst = arith.constant 2.000000e-01 : f32
    %6 = vector.broadcast %cst : f32 to vector<3x1xf32>
    %c1_i32 = arith.constant 1 : i32
    %7 = vector.broadcast %c1_i32 : i32 to vector<3x1xi32>
    %8 = arith.cmpi eq, %5, %7 : vector<3x1xi32>
    %cst_4 = arith.constant 5.000000e-01 : f32
    %9 = vector.broadcast %cst_4 : f32 to vector<3x1xf32>
    %10 = arith.select %8, %9, %6 : vector<3x1xi1>, vector<3x1xf32>
    %c2_i32 = arith.constant 2 : i32
    %11 = vector.broadcast %c2_i32 : i32 to vector<3x1xi32>
    %12 = arith.cmpi eq, %5, %11 : vector<3x1xi32>
    %cst_5 = arith.constant 8.000000e-01 : f32
    %13 = vector.broadcast %cst_5 : f32 to vector<3x1xf32>
    %14 = arith.select %12, %13, %10 : vector<3x1xi1>, vector<3x1xf32>
    %15 = vector.broadcast %4 : vector<1x128xf32> to vector<3x128xf32>
    %16 = arith.subf %15, %3 : vector<3x128xf32>
    %17 = vector.broadcast %14 : vector<3x1xf32> to vector<3x128xf32>
    %18 = arith.mulf %17, %16 : vector<3x128xf32>
    %cst_6 = arith.constant 0.000000e+00 : f32
    %19 = vector.broadcast %cst_6 : f32 to vector<3x128xf32>
    %20 = arith.subf %19, %16 : vector<3x128xf32>
    %cst_7 = arith.constant 0.000000e+00 : f32
    %21 = vector.broadcast %cst_7 : f32 to vector<3x128xf32>
    %22 = arith.maximumf %20, %21 : vector<3x128xf32>
    %23 = arith.addf %18, %22 : vector<3x128xf32>
    %c0_8 = arith.constant 0 : index
    %c0_9 = arith.constant 0 : index
    %24 = vector.load %arg5[%c0_8, %c0_9] : memref<1x128xf32, #tpu.memory_space<vmem>>, vector<1x128xf32>
    %cst_10 = arith.constant dense<0.000000e+00> : vector<128xf32>
    %25 = vector.multi_reduction <add>, %23, %cst_10 [0] : vector<3x128xf32> to vector<128xf32>
    %26 = vector.shape_cast %25 : vector<128xf32> to vector<1x128xf32>
    %27 = arith.addf %24, %26 : vector<1x128xf32>
    %c0_11 = arith.constant 0 : index
    %c0_12 = arith.constant 0 : index
    %28 = vector.load %arg5[%c0_11, %c0_12] : memref<1x128xf32, #tpu.memory_space<vmem>>, vector<1x128xf32>
    tpu.vector_store %arg5[%c0_11, %c0_12], %27 {strides = array<i32>} : memref<1x128xf32, #tpu.memory_space<vmem>>, vector<1x128xf32>,
    %c0_i32_13 = arith.constant 0 : i32
    %29 = arith.cmpi eq, %arg1, %c0_i32_13 : i32
    %30 = arith.extui %29 : i1 to i32
    %c0_i32_14 = arith.constant 0 : i32
    %31 = arith.cmpi ne, %30, %c0_i32_14 : i32
    scf.if %31 {
      %cst_15 = arith.constant 0.000000e+00 : f32
      %32 = vector.broadcast %cst_15 : f32 to vector<1x128xf32>
      %c0_i32_16 = arith.constant 0 : i32
      %c128_i32 = arith.constant 128 : i32
      %33 = arith.muli %c0_i32_16, %c128_i32 : i32
      %34 = tpu.assume_multiple %33, 128 : i32
      %c0_17 = arith.constant 0 : index
      %35 = arith.index_cast %34 : i32 to index
      %36 = vector.load %arg5[%c0_17, %35] : memref<1x128xf32, #tpu.memory_space<vmem>>, vector<1x128xf32>
      %37 = arith.addf %32, %36 : vector<1x128xf32>
      %c1_i32_18 = arith.constant 1 : i32
      %c0_19 = arith.constant 0 : index
      %c0_20 = arith.constant 0 : index
      %38 = vector.load %arg4[%c0_19, %c0_20] : memref<8x128xf32, #tpu.memory_space<vmem>>, vector<1x128xf32>
      tpu.vector_store %arg4[%c0_19, %c0_20], %37 {strides = array<i32>} : memref<8x128xf32, #tpu.memory_space<vmem>>, vector<1x128xf32>,
    } else {
    }
    return
  }
  func.func @transform_0(%arg0: i32, %arg1: i32) -> (i32, i32) {
    %c1_i32 = arith.constant 1 : i32
    %0 = arith.muli %arg0, %c1_i32 : i32
    %1 = arith.addi %0, %arg1 : i32
    %c0_i32 = arith.constant 0 : i32
    %c0_i32_0 = arith.constant 0 : i32
    return %c0_i32, %1 : i32, i32
  }
  func.func @transform_1(%arg0: i32, %arg1: i32) -> (i32, i32) {
    %c1_i32 = arith.constant 1 : i32
    %0 = arith.muli %arg0, %c1_i32 : i32
    %1 = arith.addi %0, %arg1 : i32
    %c0_i32 = arith.constant 0 : i32
    %c0_i32_0 = arith.constant 0 : i32
    return %c0_i32, %1 : i32, i32
  }
  func.func @transform_2(%arg0: i32, %arg1: i32) -> (i32, i32) {
    %c0_i32 = arith.constant 0 : i32
    %c0_i32_0 = arith.constant 0 : i32
    return %arg0, %c0_i32 : i32, i32
  }
}

</mosaic_0001>

<llo_original>
// kernel: tpu_custom_call.1
$region0: #{tpu_custom_call.1}
  #allocation0 [shape = 'u32[]', space=smem, size = 0x4, offset = 0x4, fixed_abs, tag = 'smem constant byte address 0x4 - core index']
  #allocation1 [shape = 'u32[144,128]{1,0:T(1,128)}', space=vmem, size = 0x12000, scoped, tag = 'internal scratch']
  #allocation2 [shape = 'f32[1,128]{1,0:T(1,128)}', space=vmem, size = 0x200, scoped, tag = 'scratch operand']
  %s0 = inlined_call_operand.hbm [shape: f32[3,128], index: 0, kind: input, shape index: {}]
  %s1 = inlined_call_operand.vmem [shape: f32[1,128], index: 1, kind: input, shape index: {}]
  %s2 = inlined_call_operand.hbm [shape: f32[8,128], index: 2, kind: output, shape index: {}]
  %s3 = sld [smem:[#allocation0]]
  $region30: #{tpu_custom_call.1} parent=0
    _
  %s5 = ssub.s32 1, %s3
  %s6 = scalar_select 0, %s5, %s3
  $region1: #{tpu_custom_call.1} parent=0
    #allocation3 [shape = 'u8[2048]{0}', space=vmem, size = 0x800, scoped, tag = 'input window, operand 0, single buffered']
    #allocation4 [shape = 's32[1]{0}', space=sflag, size = 0x4, scoped, tag = 'scoped memory for tpu_custom_call.1']
    #allocation5 [shape = 's32[1]{0}', space=sflag, size = 0x4, scoped, tag = 'scoped memory for tpu_custom_call.1']
    #allocation6 [shape = 'u8[4096]{0}', space=vmem, size = 0x1000, scoped, tag = 'output window, operand 0, single buffered']
    %7 = vsyncpa [#allocation4], 0
    %8 = vsyncpa [#allocation5], 0
    // Predicated region
    $region2: #{tpu_custom_call.1} parent=1 // pred_check
      _
    $region3: #{tpu_custom_call.1} parent=1 // pred_check_branch
      %10 = sbr.rel (0) target = $region5
    $region4: #{tpu_custom_call.1} parent=1 // pred_region
      %s11 = sadd.s32 0, 0
      %s13 = ssub.s32 64, 64
      %14 = vsyncadd [#allocation4], %s13
      %s15 = smul.addr %s11, 64
      %s16 = scalar_lea.hbm %s0, %s15
      %s18 = sshll.u32 [#allocation3], 4
      %s19 = int_to_ptr.vmem [resolvable:$true] %s18
      %21 = dma.hbm_to_vmem [thread:$0]  %s16, 64, %s19, [#allocation4]
    $region5: #{tpu_custom_call.1} parent=1 // pred_fallthru
      _
    // Predicated region
    $region6: #{tpu_custom_call.1} parent=1 // pred_check
      _
    $region7: #{tpu_custom_call.1} parent=1 // pred_check_branch
      %23 = sbr.rel (0) target = $region9
    $region8: #{tpu_custom_call.1} parent=1 // pred_region
      %s24 = sadd.s32 0, 0
      %p25 = scmp.lt.s32.totalorder %s24, 0
      %s26 = scalar_select %p25, %s24, 0
      %s27 = scalar_lea.vmem %s1, %s26
      %s28 = sadd.s32 0, 0
    $region9: #{tpu_custom_call.1} parent=1 // pred_fallthru
      _
    // Predicated region
    $region10: #{tpu_custom_call.1} parent=1 // pred_check
      _
    $region11: #{tpu_custom_call.1} parent=1 // pred_check_branch
      %30 = sbr.rel (0) target = $region13
    $region12: #{tpu_custom_call.1} parent=1 // pred_region
      %31 = dma.done [#allocation4], 64
    $region13: #{tpu_custom_call.1} parent=1 // pred_fallthru
      _
    %s32 = sadd.s32 0, 0
    %p33 = scmp.lt.s32.totalorder %s32, 0
    %s34 = scalar_select %p33, %s32, 0
    %s35 = scalar_lea.vmem %s1, %s34
    %s36 = sadd.s32 0, 0
    %s37 = sadd.s32 0, 0
    %p38 = scmp.lt.s32.totalorder %s37, 0
    %s39 = scalar_select %p38, %s37, 0
    %s40 = scalar_lea.vmem %s1, %s39
    %s41 = sadd.s32 0, 0
    %p42 = scmp.eq.s32.totalorder 0, 0
    // Predicated region
    $region14: #{tpu_custom_call.1} parent=1 // pred_check
      %p43 = pneg %p42
    $region15: #{tpu_custom_call.1} parent=1 // pred_check_branch
      %45 = sbr.rel (%p43) target = $region17
    $region16: #{tpu_custom_call.1} parent=1 // pred_region
      %46 = vst [vmem:[#allocation2] sm:$0x1] 0.0
      %47 = vst [vmem:[#allocation6] sm:$0xff] 0.0
    $region17: #{tpu_custom_call.1} parent=1 // pred_fallthru
      _
    %v48 = vld [vmem:[#allocation3] sm:$0x7]
    %v49 = vld [vmem:[%s40] sm:$0x1]
    %v50 = vlaneseq
    %v51 = vshrl.u32 %v50, 7
    %vm52 = vcmp.eq.s32.totalorder %v51, 1
    %v53 = vsel %vm52, 0.5, 0.2
    %vm54 = vcmp.eq.s32.totalorder %v51, 2
    %v55 = vsel %vm54, 0.8, %v53
    %v57 = vlaneseq
    %v58 = vshrl.u32 %v57, 7
    %v59 = vsub.s32 0, %v58
    %v60 = vrot.slane %v49, %v59
    %v62 = vsub.f32 %v60, %v48
    %v63 = vmul.f32 %v55, %v62
    %v64 = vsub.f32 0.0, %v62
    %v65 = vmax.f32 %v64, 0.0
    %v66 = vadd.f32 %v63, %v65
    %v67 = vld [vmem:[#allocation2] sm:$0x1]
    %vm68 = vcmask 1042432
    %v69 = vsel %vm68, %v66, 0.0
    %v70 = vrot.slane %v69, 4
    %v71 = vadd.f32 %v69, %v70
    %v72 = vrot.slane %v71, 2
    %v73 = vadd.f32 %v71, %v72
    %v74 = vrot.slane %v73, 1
    %v75 = vadd.f32 %v73, %v74
    %v76 = vadd.f32 %v67, %v75
    %77 = vst [vmem:[#allocation2] sm:$0x1] %v76
    // Predicated region
    $region18: #{tpu_custom_call.1} parent=1 // pred_check
      %p78 = pneg %p42
    $region19: #{tpu_custom_call.1} parent=1 // pred_check_branch
      %80 = sbr.rel (%p78) target = $region21
    $region20: #{tpu_custom_call.1} parent=1 // pred_region
      %v81 = vld [vmem:[#allocation2] sm:$0x1]
      %v82 = vadd.f32 %v81, 0.0
      %83 = vst [vmem:[#allocation6] sm:$0x1] %v82
    $region21: #{tpu_custom_call.1} parent=1 // pred_fallthru
      _
    // Predicated region
    $region22: #{tpu_custom_call.1} parent=1 // pred_check
      _
    $region23: #{tpu_custom_call.1} parent=1 // pred_check_branch
      %85 = sbr.rel (0) target = $region25
    $region24: #{tpu_custom_call.1} parent=1 // pred_region
      %s87 = ssub.s32 128, 128
      %88 = vsyncadd [#allocation5], %s87
      %s90 = sshll.u32 [#allocation6], 4
      %s91 = int_to_ptr.vmem [resolvable:$true] %s90
      %93 = dma.vmem_to_hbm [thread:$0]  %s91, 128, %s2, [#allocation5]
    $region25: #{tpu_custom_call.1} parent=1 // pred_fallthru
      _
    // Predicated region
    $region26: #{tpu_custom_call.1} parent=1 // pred_check
      _
    $region27: #{tpu_custom_call.1} parent=1 // pred_check_branch
      %95 = sbr.rel (0) target = $region29
    $region28: #{tpu_custom_call.1} parent=1 // pred_region
      %96 = dma.done [#allocation5], 128
    $region29: #{tpu_custom_call.1} parent=1 // pred_fallthru
      _
    %97 = vsyncpa [#allocation4], 1
    %98 = vsyncpa [#allocation5], 1

</llo_original>
